<compile_context>
chip_gen: v7x
topology: tpu7x:2x2x1
jax: 0.10.0
libtpu: 0.0.40
codegen_flags: <defaults>
</compile_context>

<pallas_src>
import functools

import jax
import jax.numpy as jnp
from jax.experimental import pallas as pl
from jax.experimental.pallas import tpu as pltpu


def _aspp2_kernel(x_ref, w_ref, b_ref, o_ref, xcol_ref, *, tap_starts, cin_pad, m):
    """Fused conv0(x) + conv1(x) for one batch element as one deep-K matmul.

    x_ref:    (1, Cin_pad, L)   zero-padded image, spatial dims flattened
    w_ref:    (Cout, K)         packed weights, K = 18 * Cin_pad
    b_ref:    (Cout, 1)         b1 + b2
    o_ref:    (1, Cout, M)      M = Hout * Wp  (lane-dense flat spatial)
    xcol_ref: (K, M) f32 VMEM scratch (im2col buffer)
    """
    # im2col gather: each of the 18 (kh, kw, conv) taps is one contiguous
    # static-offset slice of the flat spatial axis. All row offsets into the
    # scratch are multiples of 8 (sublane-aligned) by construction.
    for r, start in enumerate(tap_starts):
        xcol_ref[pl.ds(r * cin_pad, cin_pad), :] = x_ref[0, :, pl.ds(start, m)]

    # Single MXU matmul: (Cout, K) @ (K, M) -> (Cout, M); spatial dim on lanes.
    acc = jnp.dot(w_ref[...], xcol_ref[...], preferred_element_type=jnp.float32)
    o_ref[0] = (acc + b_ref[...]).astype(o_ref.dtype)


def classifier_module_forward(x_nchw, w1, b1, d1, p1, w2, b2, d2, p2):
    """x_nchw: (N, Cin, H, W); w*: (Cout, Cin, 3, 3) torch OIHW; b*: (Cout,)."""
    N, Cin, H, W = x_nchw.shape
    Cout = w1.shape[0]

    Hout1, Wout1 = H + 2 * p1 - 2 * d1, W + 2 * p1 - 2 * d1
    Hout2, Wout2 = H + 2 * p2 - 2 * d2, W + 2 * p2 - 2 * d2
    assert (Hout1, Wout1) == (Hout2, Wout2), "conv outputs must match to be summed"
    Hout, Wout = Hout1, Wout1
    assert Hout >= 1 and Wout >= 1

    pmax = max(p1, p2)
    cin_pad = max(8, -(-Cin // 8) * 8)   # sublane-aligned channel count
    Hp = H + 2 * pmax + 1                # +1 row so the last tap's flat slice is in-bounds
    Wp = W + 2 * pmax
    L = Hp * Wp
    M = Hout * Wp                        # lane-dense flat output width
    K = 2 * 9 * cin_pad

    # --- plain-JAX glue: pad once, flatten spatial, pack weights -------------
    xp = jnp.pad(x_nchw, ((0, 0), (0, cin_pad - Cin), (pmax, pmax + 1), (pmax, pmax)))
    x_flat = xp.reshape(N, cin_pad, L)

    w1p = jnp.pad(w1, ((0, 0), (0, cin_pad - Cin), (0, 0), (0, 0)))
    w2p = jnp.pad(w2, ((0, 0), (0, cin_pad - Cin), (0, 0), (0, 0)))
    ws = jnp.stack([w1p, w2p], axis=0)                       # (2, Cout, Cin_pad, 3, 3)
    # K ordering: (kh, kw, conv, cin) -> must match tap_starts order below.
    w_packed = jnp.transpose(ws, (1, 3, 4, 0, 2)).reshape(Cout, K)
    b_sum = (b1 + b2).reshape(Cout, 1)

    # Static flat start offset of each (kh, kw, conv) tap in the padded image.
    tap_starts = []
    for kh in range(3):
        for kw in range(3):
            for d, p in ((d1, p1), (d2, p2)):
                off = pmax - p
                start = (off + kh * d) * Wp + off + kw * d
                assert 0 <= start and start + M <= L
                tap_starts.append(start)
    tap_starts = tuple(tap_starts)

    kernel = functools.partial(_aspp2_kernel, tap_starts=tap_starts,
                               cin_pad=cin_pad, m=M)

    # TODO(synk): for large ASPP inputs (e.g. 65x65 x Cin=2048) add an H-tiled
    # second "parallel" grid axis so the per-step VMEM footprint stays within
    # v7x's 64 MiB and both TensorCores get intra-image work.
    out_flat = pl.pallas_call(
        kernel,
        out_shape=jax.ShapeDtypeStruct((N, Cout, M), x_nchw.dtype),
        grid_spec=pltpu.PrefetchScalarGridSpec(
            num_scalar_prefetch=0,
            grid=(N,),
            in_specs=[
                pl.BlockSpec((1, cin_pad, L), lambda n: (n, 0, 0)),
                pl.BlockSpec((Cout, K), lambda n: (0, 0)),
                pl.BlockSpec((Cout, 1), lambda n: (0, 0)),
            ],
            out_specs=pl.BlockSpec((1, Cout, M), lambda n: (n, 0, 0)),
            scratch_shapes=[pltpu.VMEM((K, M), jnp.float32)],
        ),
        compiler_params=pltpu.CompilerParams(
            dimension_semantics=("parallel",)),
    )(x_flat, w_packed, b_sum)

    # (N, Cout, Hout*Wp) -> NCHW; drop the (Wp - Wout) wrap-around columns.
    return out_flat.reshape(N, Cout, Hout, Wp)[:, :, :, :Wout]


def _ref_conv(x, w, b, d, p):
    out = jax.lax.conv_general_dilated(
        x, w, window_strides=(1, 1), padding=[(p, p), (p, p)],
        rhs_dilation=(d, d),
        dimension_numbers=("NCHW", "OIHW", "NCHW"))
    return out + b[None, :, None, None]


if __name__ == "__main__":
    # Small shapes consistent with the module: ASPP-style classifier head.
    N, Cin, H, W = 2, 4, 16, 16
    num_classes = 5
    dilation_series = [1, 2, 3, 4]   # only the first two are ever used (see forward)
    padding_series = [1, 2, 3, 4]

    key = jax.random.PRNGKey(0)
    kx, kw1, kb1, kw2, kb2 = jax.random.split(key, 5)

    x = jax.random.normal(kx, (N, Cin, H, W), jnp.float32)
    # Deterministic init: weights ~ N(0, 0.01) as in the module's __init__.
    w1 = 0.01 * jax.random.normal(kw1, (num_classes, Cin, 3, 3), jnp.float32)
    w2 = 0.01 * jax.random.normal(kw2, (num_classes, Cin, 3, 3), jnp.float32)
    b1 = 0.1 * jax.random.normal(kb1, (num_classes,), jnp.float32)
    b2 = 0.1 * jax.random.normal(kb2, (num_classes,), jnp.float32)

    d1, p1 = dilation_series[0], padding_series[0]
    d2, p2 = dilation_series[1], padding_series[1]

    out = classifier_module_forward(x, w1, b1, d1, p1, w2, b2, d2, p2)
    out = jax.block_until_ready(out)

    ref = _ref_conv(x, w1, b1, d1, p1) + _ref_conv(x, w2, b2, d2, p2)
    assert out.shape == ref.shape == (N, num_classes, H, W)
    assert jnp.allclose(out, ref, atol=1e-4, rtol=1e-4), "mismatch vs reference conv"

    print("KERNEL_OK")
</pallas_src>

<mosaic_0001>
module attributes {stable_mosaic.version = 11 : i64} {
  func.func @_aspp2_kernel(%arg0: i32, %arg1: memref<1x8x420xf32, #tpu.memory_space<vmem>>, %arg2: memref<5x144xf32, #tpu.memory_space<vmem>>, %arg3: memref<5x1xf32, #tpu.memory_space<vmem>>, %arg4: memref<1x5x320xf32, #tpu.memory_space<vmem>>, %arg5: memref<144x320xf32, #tpu.memory_space<vmem>>) attributes {dimension_semantics = [#tpu.dimension_semantics<parallel>], iteration_bounds = array<i64: 2>, scalar_prefetch = 0 : i64, scratch_operands = 1 : i64, tpu.core_type = #tpu.core_type<tc>, window_params = [{transform_indices = @transform_0, window_bounds = array<i64: 1, 8, 420>}, {pipeline_mode = #tpu.pipeline_mode<synchronous>, transform_indices = @transform_1, window_bounds = array<i64: 5, 144>}, {pipeline_mode = #tpu.pipeline_mode<synchronous>, transform_indices = @transform_2, window_bounds = array<i64: 5, 1>}, {transform_indices = @transform_3, window_bounds = array<i64: 1, 5, 320>}]} {
    %c0 = arith.constant 0 : index
    %c0_0 = arith.constant 0 : index
    %c21 = arith.constant 21 : index
    %0 = vector.load %arg1[%c0, %c0_0, %c21] : memref<1x8x420xf32, #tpu.memory_space<vmem>>, vector<1x8x320xf32>
    %1 = vector.shape_cast %0 : vector<1x8x320xf32> to vector<8x320xf32>
    %c0_1 = arith.constant 0 : index
    %c0_2 = arith.constant 0 : index
    %2 = vector.load %arg5[%c0_1, %c0_2] : memref<144x320xf32, #tpu.memory_space<vmem>>, vector<8x320xf32>
    tpu.vector_store %arg5[%c0_1, %c0_2], %1 {strides = array<i32>} : memref<144x320xf32, #tpu.memory_space<vmem>>, vector<8x320xf32>,
    %c0_3 = arith.constant 0 : index
    %c0_4 = arith.constant 0 : index
    %c0_5 = arith.constant 0 : index
    %3 = vector.load %arg1[%c0_3, %c0_4, %c0_5] : memref<1x8x420xf32, #tpu.memory_space<vmem>>, vector<1x8x320xf32>
    %4 = vector.shape_cast %3 : vector<1x8x320xf32> to vector<8x320xf32>
    %c8 = arith.constant 8 : index
    %c0_6 = arith.constant 0 : index
    %5 = vector.load %arg5[%c8, %c0_6] : memref<144x320xf32, #tpu.memory_space<vmem>>, vector<8x320xf32>
    tpu.vector_store %arg5[%c8, %c0_6], %4 {strides = array<i32>} : memref<144x320xf32, #tpu.memory_space<vmem>>, vector<8x320xf32>,
    %c0_7 = arith.constant 0 : index
    %c0_8 = arith.constant 0 : index
    %c22 = arith.constant 22 : index
    %6 = vector.load %arg1[%c0_7, %c0_8, %c22] : memref<1x8x420xf32, #tpu.memory_space<vmem>>, vector<1x8x320xf32>
    %7 = vector.shape_cast %6 : vector<1x8x320xf32> to vector<8x320xf32>
    %c16 = arith.constant 16 : index
    %c0_9 = arith.constant 0 : index
    %8 = vector.load %arg5[%c16, %c0_9] : memref<144x320xf32, #tpu.memory_space<vmem>>, vector<8x320xf32>
    tpu.vector_store %arg5[%c16, %c0_9], %7 {strides = array<i32>} : memref<144x320xf32, #tpu.memory_space<vmem>>, vector<8x320xf32>,
    %c0_10 = arith.constant 0 : index
    %c0_11 = arith.constant 0 : index
    %c2 = arith.constant 2 : index
    %9 = vector.load %arg1[%c0_10, %c0_11, %c2] : memref<1x8x420xf32, #tpu.memory_space<vmem>>, vector<1x8x320xf32>
    %10 = vector.shape_cast %9 : vector<1x8x320xf32> to vector<8x320xf32>
    %c24 = arith.constant 24 : index
    %c0_12 = arith.constant 0 : index
    %11 = vector.load %arg5[%c24, %c0_12] : memref<144x320xf32, #tpu.memory_space<vmem>>, vector<8x320xf32>
    tpu.vector_store %arg5[%c24, %c0_12], %10 {strides = array<i32>} : memref<144x320xf32, #tpu.memory_space<vmem>>, vector<8x320xf32>,
    %c0_13 = arith.constant 0 : index
    %c0_14 = arith.constant 0 : index
    %c23 = arith.constant 23 : index
    %12 = vector.load %arg1[%c0_13, %c0_14, %c23] : memref<1x8x420xf32, #tpu.memory_space<vmem>>, vector<1x8x320xf32>
    %13 = vector.shape_cast %12 : vector<1x8x320xf32> to vector<8x320xf32>
    %c32 = arith.constant 32 : index
    %c0_15 = arith.constant 0 : index
    %14 = vector.load %arg5[%c32, %c0_15] : memref<144x320xf32, #tpu.memory_space<vmem>>, vector<8x320xf32>
    tpu.vector_store %arg5[%c32, %c0_15], %13 {strides = array<i32>} : memref<144x320xf32, #tpu.memory_space<vmem>>, vector<8x320xf32>,
    %c0_16 = arith.constant 0 : index
    %c0_17 = arith.constant 0 : index
    %c4 = arith.constant 4 : index
    %15 = vector.load %arg1[%c0_16, %c0_17, %c4] : memref<1x8x420xf32, #tpu.memory_space<vmem>>, vector<1x8x320xf32>
    %16 = vector.shape_cast %15 : vector<1x8x320xf32> to vector<8x320xf32>
    %c40 = arith.constant 40 : index
    %c0_18 = arith.constant 0 : index
    %17 = vector.load %arg5[%c40, %c0_18] : memref<144x320xf32, #tpu.memory_space<vmem>>, vector<8x320xf32>
    tpu.vector_store %arg5[%c40, %c0_18], %16 {strides = array<i32>} : memref<144x320xf32, #tpu.memory_space<vmem>>, vector<8x320xf32>,
    %c0_19 = arith.constant 0 : index
    %c0_20 = arith.constant 0 : index
    %c41 = arith.constant 41 : index
    %18 = vector.load %arg1[%c0_19, %c0_20, %c41] : memref<1x8x420xf32, #tpu.memory_space<vmem>>, vector<1x8x320xf32>
    %19 = vector.shape_cast %18 : vector<1x8x320xf32> to vector<8x320xf32>
    %c48 = arith.constant 48 : index
    %c0_21 = arith.constant 0 : index
    %20 = vector.load %arg5[%c48, %c0_21] : memref<144x320xf32, #tpu.memory_space<vmem>>, vector<8x320xf32>
    tpu.vector_store %arg5[%c48, %c0_21], %19 {strides = array<i32>} : memref<144x320xf32, #tpu.memory_space<vmem>>, vector<8x320xf32>,
    %c0_22 = arith.constant 0 : index
    %c0_23 = arith.constant 0 : index
    %c40_24 = arith.constant 40 : index
    %21 = vector.load %arg1[%c0_22, %c0_23, %c40_24] : memref<1x8x420xf32, #tpu.memory_space<vmem>>, vector<1x8x320xf32>
    %22 = vector.shape_cast %21 : vector<1x8x320xf32> to vector<8x320xf32>
    %c56 = arith.constant 56 : index
    %c0_25 = arith.constant 0 : index
    %23 = vector.load %arg5[%c56, %c0_25] : memref<144x320xf32, #tpu.memory_space<vmem>>, vector<8x320xf32>
    tpu.vector_store %arg5[%c56, %c0_25], %22 {strides = array<i32>} : memref<144x320xf32, #tpu.memory_space<vmem>>, vector<8x320xf32>,
    %c0_26 = arith.constant 0 : index
    %c0_27 = arith.constant 0 : index
    %c42 = arith.constant 42 : index
    %24 = vector.load %arg1[%c0_26, %c0_27, %c42] : memref<1x8x420xf32, #tpu.memory_space<vmem>>, vector<1x8x320xf32>
    %25 = vector.shape_cast %24 : vector<1x8x320xf32> to vector<8x320xf32>
    %c64 = arith.constant 64 : index
    %c0_28 = arith.constant 0 : index
    %26 = vector.load %arg5[%c64, %c0_28] : memref<144x320xf32, #tpu.memory_space<vmem>>, vector<8x320xf32>
    tpu.vector_store %arg5[%c64, %c0_28], %25 {strides = array<i32>} : memref<144x320xf32, #tpu.memory_space<vmem>>, vector<8x320xf32>,
    %c0_29 = arith.constant 0 : index
    %c0_30 = arith.constant 0 : index
    %c42_31 = arith.constant 42 : index
    %27 = vector.load %arg1[%c0_29, %c0_30, %c42_31] : memref<1x8x420xf32, #tpu.memory_space<vmem>>, vector<1x8x320xf32>
    %28 = vector.shape_cast %27 : vector<1x8x320xf32> to vector<8x320xf32>
    %c72 = arith.constant 72 : index
    %c0_32 = arith.constant 0 : index
    %29 = vector.load %arg5[%c72, %c0_32] : memref<144x320xf32, #tpu.memory_space<vmem>>, vector<8x320xf32>
    tpu.vector_store %arg5[%c72, %c0_32], %28 {strides = array<i32>} : memref<144x320xf32, #tpu.memory_space<vmem>>, vector<8x320xf32>,
    %c0_33 = arith.constant 0 : index
    %c0_34 = arith.constant 0 : index
    %c43 = arith.constant 43 : index
    %30 = vector.load %arg1[%c0_33, %c0_34, %c43] : memref<1x8x420xf32, #tpu.memory_space<vmem>>, vector<1x8x320xf32>
    %31 = vector.shape_cast %30 : vector<1x8x320xf32> to vector<8x320xf32>
    %c80 = arith.constant 80 : index
    %c0_35 = arith.constant 0 : index
    %32 = vector.load %arg5[%c80, %c0_35] : memref<144x320xf32, #tpu.memory_space<vmem>>, vector<8x320xf32>
    tpu.vector_store %arg5[%c80, %c0_35], %31 {strides = array<i32>} : memref<144x320xf32, #tpu.memory_space<vmem>>, vector<8x320xf32>,
    %c0_36 = arith.constant 0 : index
    %c0_37 = arith.constant 0 : index
    %c44 = arith.constant 44 : index
    %33 = vector.load %arg1[%c0_36, %c0_37, %c44] : memref<1x8x420xf32, #tpu.memory_space<vmem>>, vector<1x8x320xf32>
    %34 = vector.shape_cast %33 : vector<1x8x320xf32> to vector<8x320xf32>
    %c88 = arith.constant 88 : index
    %c0_38 = arith.constant 0 : index
    %35 = vector.load %arg5[%c88, %c0_38] : memref<144x320xf32, #tpu.memory_space<vmem>>, vector<8x320xf32>
    tpu.vector_store %arg5[%c88, %c0_38], %34 {strides = array<i32>} : memref<144x320xf32, #tpu.memory_space<vmem>>, vector<8x320xf32>,
    %c0_39 = arith.constant 0 : index
    %c0_40 = arith.constant 0 : index
    %c61 = arith.constant 61 : index
    %36 = vector.load %arg1[%c0_39, %c0_40, %c61] : memref<1x8x420xf32, #tpu.memory_space<vmem>>, vector<1x8x320xf32>
    %37 = vector.shape_cast %36 : vector<1x8x320xf32> to vector<8x320xf32>
    %c96 = arith.constant 96 : index
    %c0_41 = arith.constant 0 : index
    %38 = vector.load %arg5[%c96, %c0_41] : memref<144x320xf32, #tpu.memory_space<vmem>>, vector<8x320xf32>
    tpu.vector_store %arg5[%c96, %c0_41], %37 {strides = array<i32>} : memref<144x320xf32, #tpu.memory_space<vmem>>, vector<8x320xf32>,
    %c0_42 = arith.constant 0 : index
    %c0_43 = arith.constant 0 : index
    %c80_44 = arith.constant 80 : index
    %39 = vector.load %arg1[%c0_42, %c0_43, %c80_44] : memref<1x8x420xf32, #tpu.memory_space<vmem>>, vector<1x8x320xf32>
    %40 = vector.shape_cast %39 : vector<1x8x320xf32> to vector<8x320xf32>
    %c104 = arith.constant 104 : index
    %c0_45 = arith.constant 0 : index
    %41 = vector.load %arg5[%c104, %c0_45] : memref<144x320xf32, #tpu.memory_space<vmem>>, vector<8x320xf32>
    tpu.vector_store %arg5[%c104, %c0_45], %40 {strides = array<i32>} : memref<144x320xf32, #tpu.memory_space<vmem>>, vector<8x320xf32>,
    %c0_46 = arith.constant 0 : index
    %c0_47 = arith.constant 0 : index
    %c62 = arith.constant 62 : index
    %42 = vector.load %arg1[%c0_46, %c0_47, %c62] : memref<1x8x420xf32, #tpu.memory_space<vmem>>, vector<1x8x320xf32>
    %43 = vector.shape_cast %42 : vector<1x8x320xf32> to vector<8x320xf32>
    %c112 = arith.constant 112 : index
    %c0_48 = arith.constant 0 : index
    %44 = vector.load %arg5[%c112, %c0_48] : memref<144x320xf32, #tpu.memory_space<vmem>>, vector<8x320xf32>
    tpu.vector_store %arg5[%c112, %c0_48], %43 {strides = array<i32>} : memref<144x320xf32, #tpu.memory_space<vmem>>, vector<8x320xf32>,
    %c0_49 = arith.constant 0 : index
    %c0_50 = arith.constant 0 : index
    %c82 = arith.constant 82 : index
    %45 = vector.load %arg1[%c0_49, %c0_50, %c82] : memref<1x8x420xf32, #tpu.memory_space<vmem>>, vector<1x8x320xf32>
    %46 = vector.shape_cast %45 : vector<1x8x320xf32> to vector<8x320xf32>
    %c120 = arith.constant 120 : index
    %c0_51 = arith.constant 0 : index
    %47 = vector.load %arg5[%c120, %c0_51] : memref<144x320xf32, #tpu.memory_space<vmem>>, vector<8x320xf32>
    tpu.vector_store %arg5[%c120, %c0_51], %46 {strides = array<i32>} : memref<144x320xf32, #tpu.memory_space<vmem>>, vector<8x320xf32>,
    %c0_52 = arith.constant 0 : index
    %c0_53 = arith.constant 0 : index
    %c63 = arith.constant 63 : index
    %48 = vector.load %arg1[%c0_52, %c0_53, %c63] : memref<1x8x420xf32, #tpu.memory_space<vmem>>, vector<1x8x320xf32>
    %49 = vector.shape_cast %48 : vector<1x8x320xf32> to vector<8x320xf32>
    %c128 = arith.constant 128 : index
    %c0_54 = arith.constant 0 : index
    %50 = vector.load %arg5[%c128, %c0_54] : memref<144x320xf32, #tpu.memory_space<vmem>>, vector<8x320xf32>
    tpu.vector_store %arg5[%c128, %c0_54], %49 {strides = array<i32>} : memref<144x320xf32, #tpu.memory_space<vmem>>, vector<8x320xf32>,
    %c0_55 = arith.constant 0 : index
    %c0_56 = arith.constant 0 : index
    %c84 = arith.constant 84 : index
    %51 = vector.load %arg1[%c0_55, %c0_56, %c84] : memref<1x8x420xf32, #tpu.memory_space<vmem>>, vector<1x8x320xf32>
    %52 = vector.shape_cast %51 : vector<1x8x320xf32> to vector<8x320xf32>
    %c136 = arith.constant 136 : index
    %c0_57 = arith.constant 0 : index
    %53 = vector.load %arg5[%c136, %c0_57] : memref<144x320xf32, #tpu.memory_space<vmem>>, vector<8x320xf32>
    tpu.vector_store %arg5[%c136, %c0_57], %52 {strides = array<i32>} : memref<144x320xf32, #tpu.memory_space<vmem>>, vector<8x320xf32>,
    %c0_58 = arith.constant 0 : index
    %c0_59 = arith.constant 0 : index
    %54 = vector.load %arg2[%c0_58, %c0_59] : memref<5x144xf32, #tpu.memory_space<vmem>>, vector<5x144xf32>
    %c0_60 = arith.constant 0 : index
    %c0_61 = arith.constant 0 : index
    %55 = vector.load %arg5[%c0_60, %c0_61] : memref<144x320xf32, #tpu.memory_space<vmem>>, vector<144x320xf32>
    %cst = arith.constant dense<0.000000e+00> : vector<5x320xf32>
    %56 = tpu.matmul %54, %55, %cst {dimension_numbers = #tpu.dot_dimension_numbers<[1], [0], [0], [1], [0, 0, 1, 1], [], []>} : vector<5x144xf32>, vector<144x320xf32>, vector<5x320xf32> -> vector<5x320xf32>
    %c0_62 = arith.constant 0 : index
    %c0_63 = arith.constant 0 : index
    %57 = vector.load %arg3[%c0_62, %c0_63] : memref<5x1xf32, #tpu.memory_space<vmem>>, vector<5x1xf32>
    %58 = vector.broadcast %57 : vector<5x1xf32> to vector<5x320xf32>
    %59 = arith.addf %56, %58 : vector<5x320xf32>
    %c0_64 = arith.constant 0 : index
    %c0_65 = arith.constant 0 : index
    %c0_66 = arith.constant 0 : index
    %60 = vector.load %arg4[%c0_64, %c0_65, %c0_66] : memref<1x5x320xf32, #tpu.memory_space<vmem>>, vector<1x5x320xf32>
    %61 = vector.shape_cast %60 : vector<1x5x320xf32> to vector<5x320xf32>
    %62 = vector.shape_cast %59 : vector<5x320xf32> to vector<1x5x320xf32>
    tpu.vector_store %arg4[%c0_64, %c0_65, %c0_66], %62 {strides = array<i32>} : memref<1x5x320xf32, #tpu.memory_space<vmem>>, vector<1x5x320xf32>,
    return
  }
  func.func @transform_0(%arg0: i32) -> (i32, i32, i32) {
    %c0_i32 = arith.constant 0 : i32
    %c0_i32_0 = arith.constant 0 : i32
    %c0_i32_1 = arith.constant 0 : i32
    return %arg0, %c0_i32, %c0_i32_0 : i32, i32, i32
  }
  func.func @transform_1(%arg0: i32) -> (i32, i32) {
    %c0_i32 = arith.constant 0 : i32
    %c0_i32_0 = arith.constant 0 : i32
    %c0_i32_1 = arith.constant 0 : i32
    return %c0_i32, %c0_i32_0 : i32, i32
  }
  func.func @transform_2(%arg0: i32) -> (i32, i32) {
    %c0_i32 = arith.constant 0 : i32
    %c0_i32_0 = arith.constant 0 : i32
    %c0_i32_1 = arith.constant 0 : i32
    return %c0_i32, %c0_i32_0 : i32, i32
  }
  func.func @transform_3(%arg0: i32) -> (i32, i32, i32) {
    %c0_i32 = arith.constant 0 : i32
    %c0_i32_0 = arith.constant 0 : i32
    %c0_i32_1 = arith.constant 0 : i32
    return %arg0, %c0_i32, %c0_i32_0 : i32, i32, i32
  }
}

</mosaic_0001>

<llo_original>
// kernel: tpu_custom_call.1
$region0: #{tpu_custom_call.1}
  #allocation0 [shape = 'u32[]', space=smem, size = 0x4, offset = 0x4, fixed_abs, tag = 'smem constant byte address 0x4 - core index']
  #allocation1 [shape = 'u32[144,128]{1,0:T(1,128)}', space=vmem, size = 0x12000, scoped, tag = 'internal scratch']
  #allocation2 [shape = 'f32[144,320]{1,0:T(8,128)}', space=vmem, size = 0x36000, scoped, tag = 'scratch operand']
  %s0 = inlined_call_operand.hbm [shape: f32[2,8,420], index: 0, kind: input, shape index: {}]
  %s1 = inlined_call_operand.hbm [shape: f32[5,144], index: 1, kind: input, shape index: {}]
  %s2 = inlined_call_operand.vmem [shape: f32[5,1], index: 2, kind: input, shape index: {}]
  %s3 = inlined_call_operand.vmem [shape: f32[2,5,320], index: 3, kind: output, shape index: {}]
  %s4 = sld [smem:[#allocation0]]
  $region53: #{tpu_custom_call.1} parent=0
    _
  %s6 = ssub.s32 1, %s4
  %s7 = scalar_select 0, %s6, %s4
  $region1: #{tpu_custom_call.1} parent=0
    #allocation3 [shape = 'u8[32768]{0}', space=vmem, size = 0x8000, scoped, tag = 'input window, operand 0']
    #allocation4 [shape = 's32[2]{0}', space=sflag, size = 0x8, scoped, tag = 'scoped memory for tpu_custom_call.1']
    #allocation5 [shape = 'u8[8192]{0}', space=vmem, size = 0x2000, scoped, tag = 'input window, operand 1, single buffered']
    #allocation6 [shape = 's32[1]{0}', space=sflag, size = 0x4, scoped, tag = 'scoped memory for tpu_custom_call.1']
    %8 = vsyncpa [#allocation4], 0
    %s9 = scalar_lea.sflag [#allocation4], 1
    %10 = vsyncpa %s9, 0
    %11 = vsyncpa [#allocation6], 0
    loop: start=0, step=1, limit=4
    $region2: #{tpu_custom_call.1} parent=1 // loop_pre_header
      _
    $region3: #{tpu_custom_call.1} parent=1 // loop_header
      %s13 = sphi 0, %s17
      %p14 = scmp.ge.s32.totalorder %s13, 4
      %s23 = sphi 0, %s25
      %s26 = sphi 0, %s23
      %s27 = sphi 0, %s26
      %s43 = sphi 0, %s27
      %s47 = sphi 0, %s47
      %s49 = sphi 0, %s47
      %s50 = sphi 0, %s49
      %s64 = sphi 0, %s50
      %s68 = sphi 0, %s68
      %s70 = sphi 0, %s68
      %s71 = sphi 0, %s70
      %s85 = sphi 0, %s71
      %s91 = sphi 0, %s93
      %s94 = sphi 0, %s91
      %s95 = sphi 0, %s94
      %s111 = sphi 0, %s95
    $region4: #{tpu_custom_call.1} parent=1 // loop_header_branch
      %16 = sbr.rel (%p14) target = $region8
    $region5: #{tpu_custom_call.1} parent=1 // loop_body
      %s18 = ssub.s32 %s13, 1
      %s19 = ssub.s32 %s13, 2
      %s20 = sadd.s32 %s13, 1
      %s21 = ssub.s32 %s13, %s20
      %p22 = scmp.eq.s32.totalorder %s21, 0
      %s24 = sadd.s32 %s23, 1
      %s25 = scalar_select %p22, %s23, %s24
      %p28 = pneg %p22
      %p29 = scmp.eq.s32.totalorder %s13, 1
      %p30 = por %p28, %p29
      %p31 = scmp.ne.s32.totalorder %s23, %s26
      %p32 = scmp.eq.s32.totalorder %s13, 0
      %p33 = por %p31, %p32
      %p34 = scmp.ne.s32.totalorder %s23, %s26
      %p35 = scmp.eq.s32.totalorder %s18, 1
      %p36 = por %p34, %p35
      %p37 = scmp.ne.s32.totalorder %s26, %s27
      %p38 = scmp.eq.s32.totalorder %s18, 0
      %p39 = por %p37, %p38
      %p40 = scmp.ne.s32.totalorder %s26, %s27
      %p41 = scmp.eq.s32.totalorder %s19, 1
      %p42 = por %p40, %p41
      %p44 = scmp.ne.s32.totalorder %s27, %s43
      %p45 = scmp.eq.s32.totalorder %s19, 0
      %p46 = por %p44, %p45
      %s48 = sadd.s32 %s47, 1
      %p51 = scmp.eq.s32.totalorder %s13, 1
      %p52 = scmp.ne.s32.totalorder %s47, %s49
      %p53 = scmp.eq.s32.totalorder %s13, 0
      %p54 = por %p52, %p53
      %p55 = scmp.ne.s32.totalorder %s47, %s49
      %p56 = scmp.eq.s32.totalorder %s18, 1
      %p57 = por %p55, %p56
      %p58 = scmp.ne.s32.totalorder %s49, %s50
      %p59 = scmp.eq.s32.totalorder %s18, 0
      %p60 = por %p58, %p59
      %p61 = scmp.ne.s32.totalorder %s49, %s50
      %p62 = scmp.eq.s32.totalorder %s19, 1
      %p63 = por %p61, %p62
      %p65 = scmp.ne.s32.totalorder %s50, %s64
      %p66 = scmp.eq.s32.totalorder %s19, 0
      %p67 = por %p65, %p66
      %s69 = sadd.s32 %s68, 1
      %p72 = scmp.eq.s32.totalorder %s13, 1
      %p73 = scmp.ne.s32.totalorder %s68, %s70
      %p74 = scmp.eq.s32.totalorder %s13, 0
      %p75 = por %p73, %p74
      %p76 = scmp.ne.s32.totalorder %s68, %s70
      %p77 = scmp.eq.s32.totalorder %s18, 1
      %p78 = por %p76, %p77
      %p79 = scmp.ne.s32.totalorder %s70, %s71
      %p80 = scmp.eq.s32.totalorder %s18, 0
      %p81 = por %p79, %p80
      %p82 = scmp.ne.s32.totalorder %s70, %s71
      %p83 = scmp.eq.s32.totalorder %s19, 1
      %p84 = por %p82, %p83
      %p86 = scmp.ne.s32.totalorder %s71, %s85
      %p87 = scmp.eq.s32.totalorder %s19, 0
      %p88 = por %p86, %p87
      %s89 = ssub.s32 %s13, %s20
      %p90 = scmp.eq.s32.totalorder %s89, 0
      %s92 = sadd.s32 %s91, 1
      %s93 = scalar_select %p90, %s91, %s92
      %p96 = pneg %p90
      %p97 = scmp.eq.s32.totalorder %s13, 1
      %p98 = por %p96, %p97
      %p99 = scmp.ne.s32.totalorder %s91, %s94
      %p100 = scmp.eq.s32.totalorder %s13, 0
      %p101 = por %p99, %p100
      %p102 = scmp.ne.s32.totalorder %s91, %s94
      %p103 = scmp.eq.s32.totalorder %s18, 1
      %p104 = por %p102, %p103
      %p105 = scmp.ne.s32.totalorder %s94, %s95
      %p106 = scmp.eq.s32.totalorder %s18, 0
      %p107 = por %p105, %p106
      %p108 = scmp.ne.s32.totalorder %s94, %s95
      %p109 = scmp.eq.s32.totalorder %s19, 1
      %p110 = por %p108, %p109
      %p112 = scmp.ne.s32.totalorder %s95, %s111
      %p113 = scmp.eq.s32.totalorder %s19, 0
      %p114 = por %p112, %p113
      %p115 = scmp.le.s32.totalorder 1, %s13
      %p116 = scmp.lt.s32.totalorder %s13, 3
      %p117 = pnand %p115, %p116
      %p118 = pneg %p117
      // Predicated region
      $region9: #{tpu_custom_call.1} parent=5 // pred_check
        _
      $region10: #{tpu_custom_call.1} parent=5 // pred_check_branch
        %120 = sbr.rel (%p117) target = $region12
      $region11: #{tpu_custom_call.1} parent=5 // pred_region
        %s121 = ssub.s32 %s13, 1
        // Predicated region
        $region13: #{tpu_custom_call.1} parent=11 // pred_check
          %p122 = pneg %p60
        $region14: #{tpu_custom_call.1} parent=11 // pred_check_branch
          %124 = sbr.rel (%p122) target = $region16
        $region15: #{tpu_custom_call.1} parent=11 // pred_region
          %s126 = ssub.s32 256, 256
          %127 = vsyncadd [#allocation6], %s126
          %s129 = sshll.u32 [#allocation5], 4
          %s130 = int_to_ptr.vmem [resolvable:$true] %s129
          %132 = dma.hbm_to_vmem [thread:$0]  %s1, 256, %s130, [#allocation6]
        $region16: #{tpu_custom_call.1} parent=11 // pred_fallthru
          _
        // Predicated region
        $region17: #{tpu_custom_call.1} parent=11 // pred_check
          %p133 = pneg %p81
        $region18: #{tpu_custom_call.1} parent=11 // pred_check_branch
          %135 = sbr.rel (%p133) target = $region20
        $region19: #{tpu_custom_call.1} parent=11 // pred_region
          _
        $region20: #{tpu_custom_call.1} parent=11 // pred_fallthru
          _
      $region12: #{tpu_custom_call.1} parent=5 // pred_fallthru
        _
      %p136 = scmp.lt.s32.totalorder %s13, 2
      // Predicated region
      $region21: #{tpu_custom_call.1} parent=5 // pred_check
        %p137 = pneg %p136
      $region22: #{tpu_custom_call.1} parent=5 // pred_check_branch
        %139 = sbr.rel (%p137) target = $region24
      $region23: #{tpu_custom_call.1} parent=5 // pred_region
        // Predicated region
        $region25: #{tpu_custom_call.1} parent=23 // pred_check
          %p140 = pneg %p33
        $region26: #{tpu_custom_call.1} parent=23 // pred_check_branch
          %142 = sbr.rel (%p140) target = $region28
        $region27: #{tpu_custom_call.1} parent=23 // pred_region
          %s143 = sand.u32 %s23, 1
          %s144 = scalar_lea.sflag [#allocation4], %s143
          %s145 = sand.u32 %s23, 1
          %s146 = smul.addr %s145, 32
          %s147 = scalar_lea.vmem [#allocation3], %s146
          %s149 = ssub.s32 512, 512
          %150 = vsyncadd %s144, %s149
          %s151 = smul.addr %s13, 4
          %s152 = smul.addr %s151, 128
          %s153 = scalar_lea.hbm %s0, %s152
          %s155 = sshll.u32 %s147, 4
          %s156 = int_to_ptr.vmem [resolvable:$true] %s155
          %158 = dma.hbm_to_vmem [thread:$0]  %s153, 512, %s156, %s144
        $region28: #{tpu_custom_call.1} parent=23 // pred_fallthru
          _
      $region24: #{tpu_custom_call.1} parent=5 // pred_fallthru
        _
      %p159 = scmp.le.s32.totalorder 1, %s13
      %p160 = scmp.lt.s32.totalorder %s13, 3
      %p161 = pnand %p159, %p160
      %p162 = pneg %p161
      // Predicated region
      $region29: #{tpu_custom_call.1} parent=5 // pred_check
        _
      $region30: #{tpu_custom_call.1} parent=5 // pred_check_branch
        %164 = sbr.rel (%p161) target = $region32
      $region31: #{tpu_custom_call.1} parent=5 // pred_region
        %s165 = ssub.s32 %s13, 1
        %s166 = sand.u32 %s26, 1
        %s167 = scalar_lea.sflag [#allocation4], %s166
        %s168 = sand.u32 %s26, 1
        %s169 = smul.addr %s168, 32
        %s170 = scalar_lea.vmem [#allocation3], %s169
        // Predicated region
        $region33: #{tpu_custom_call.1} parent=31 // pred_check
          %p171 = pneg %p39
        $region34: #{tpu_custom_call.1} parent=31 // pred_check_branch
          %173 = sbr.rel (%p171) target = $region36
        $region35: #{tpu_custom_call.1} parent=31 // pred_region
          %174 = dma.done %s167, 512
        $region36: #{tpu_custom_call.1} parent=31 // pred_fallthru
          _
        // Predicated region
        $region37: #{tpu_custom_call.1} parent=31 // pred_check
          %p175 = pneg %p60
        $region38: #{tpu_custom_call.1} parent=31 // pred_check_branch
          %177 = sbr.rel (%p175) target = $region40
        $region39: #{tpu_custom_call.1} parent=31 // pred_region
          %178 = dma.done [#allocation6], 256
        $region40: #{tpu_custom_call.1} parent=31 // pred_fallthru
          _
        %s179 = sand.u32 %s26, 1
        %s180 = scalar_lea.sflag [#allocation4], %s179
        %s181 = sand.u32 %s26, 1
        %s182 = smul.addr %s181, 32
        %s183 = scalar_lea.vmem [#allocation3], %s182
        %p184 = pneg %p39
        %p185 = pneg %p36
        %p186 = pneg %p60
        %p187 = pneg %p57
        %p188 = pneg %p81
        %p189 = pneg %p78
        %p190 = pneg %p107
        %p191 = pneg %p104
        %p192 = scmp.lt.s32.totalorder %s18, 1
        %s193 = scalar_select %p192, %s18, 1
        %s194 = smul.addr %s193, 3
        %s195 = smul.addr %s194, 8
        %s196 = scalar_lea.vmem %s3, %s195
        %p197 = scmp.lt.s32.totalorder %s18, 1
        %s198 = scalar_select %p197, %s18, 1
        %s199 = smul.addr %s198, 3
        %s200 = smul.addr %s199, 8
        %s201 = scalar_lea.vmem %s3, %s200
        %v202 = vld [vmem:[%s170] sm:$0xff]
        %v203 = vld [vmem:[%s170 + $0x8] sm:$0xff]
        %v204 = vld [vmem:[%s170 + $0x10] sm:$0xff]
        %208 = vrot.lane.b32.xlu0 %v202, 107
        %v209 = vpop.permute.xlu0 %208
        %210 = vrot.lane.b32.xlu0 %v203, 107
        %v211 = vpop.permute.xlu0 %210
        %212 = vrot.lane.b32.xlu0 %v204, 107
        %v213 = vpop.permute.xlu0 %212
        %vm214 = vcmask 875520
        %v215 = vsel %vm214, %v209, %v211
        %v216 = vsel %vm214, %v211, %v213
        %220 = vst [vmem:[#allocation2] sm:$0xff] %v215
        %221 = vst [vmem:[#allocation2 + $0x8] sm:$0xff] %v216
        %vm222 = vcmask 523264
        %223 = vst.msk [vmem:[#allocation2 + $0x10] sm:$0xff] %vm222, %v213
        %v224 = vld [vmem:[%s170] sm:$0xff]
        %v225 = vld [vmem:[%s170 + $0x8] sm:$0xff]
        %v226 = vld [vmem:[%s170 + $0x10] sm:$0xff]
        %227 = vst [vmem:[#allocation2 + $0x18] sm:$0xff] %v224
        %228 = vst [vmem:[#allocation2 + $0x20] sm:$0xff] %v225
        %229 = vst.msk [vmem:[#allocation2 + $0x28] sm:$0xff] %vm222, %v226
        %v230 = vld [vmem:[%s170] sm:$0xff]
        %v231 = vld [vmem:[%s170 + $0x8] sm:$0xff]
        %v232 = vld [vmem:[%s170 + $0x10] sm:$0xff]
        %236 = vrot.lane.b32.xlu0 %v230, 106
        %v237 = vpop.permute.xlu0 %236
        %238 = vrot.lane.b32.xlu0 %v231, 106
        %v239 = vpop.permute.xlu0 %238
        %240 = vrot.lane.b32.xlu0 %v232, 106
        %v241 = vpop.permute.xlu0 %240
        %vm242 = vcmask 867328
        %v243 = vsel %vm242, %v237, %v239
        %v244 = vsel %vm242, %v239, %v241
        %248 = vst [vmem:[#allocation2 + $0x30] sm:$0xff] %v243
        %249 = vst [vmem:[#allocation2 + $0x38] sm:$0xff] %v244
        %250 = vst.msk [vmem:[#allocation2 + $0x40] sm:$0xff] %vm222, %v241
        %v251 = vld [vmem:[%s170] sm:$0xff]
        %v252 = vld [vmem:[%s170 + $0x8] sm:$0xff]
        %v253 = vld [vmem:[%s170 + $0x10] sm:$0xff]
        %257 = vrot.lane.b32.xlu0 %v251, 126
        %v258 = vpop.permute.xlu0 %257
        %259 = vrot.lane.b32.xlu0 %v252, 126
        %v260 = vpop.permute.xlu0 %259
        %261 = vrot.lane.b32.xlu0 %v253, 126
        %v262 = vpop.permute.xlu0 %261
        %vm263 = vcmask 1031168
        %v264 = vsel %vm263, %v258, %v260
        %v265 = vsel %vm263, %v260, %v262
        %269 = vst [vmem:[#allocation2 + $0x48] sm:$0xff] %v264
        %270 = vst [vmem:[#allocation2 + $0x50] sm:$0xff] %v265
        %271 = vst.msk [vmem:[#allocation2 + $0x58] sm:$0xff] %vm222, %v262
        %v272 = vld [vmem:[%s170] sm:$0xff]
        %v273 = vld [vmem:[%s170 + $0x8] sm:$0xff]
        %v274 = vld [vmem:[%s170 + $0x10] sm:$0xff]
        %278 = vrot.lane.b32.xlu0 %v272, 105
        %v279 = vpop.permute.xlu0 %278
        %280 = vrot.lane.b32.xlu0 %v273, 105
        %v281 = vpop.permute.xlu0 %280
        %282 = vrot.lane.b32.xlu0 %v274, 105
        %v283 = vpop.permute.xlu0 %282
        %vm284 = vcmask 859136
        %v285 = vsel %vm284, %v279, %v281
        %v286 = vsel %vm284, %v281, %v283
        %290 = vst [vmem:[#allocation2 + $0x60] sm:$0xff] %v285
        %291 = vst [vmem:[#allocation2 + $0x68] sm:$0xff] %v286
        %292 = vst.msk [vmem:[#allocation2 + $0x70] sm:$0xff] %vm222, %v283
        %v293 = vld [vmem:[%s170] sm:$0xff]
        %v294 = vld [vmem:[%s170 + $0x8] sm:$0xff]
        %v295 = vld [vmem:[%s170 + $0x10] sm:$0xff]
        %299 = vrot.lane.b32.xlu0 %v293, 124
        %v300 = vpop.permute.xlu0 %299
        %301 = vrot.lane.b32.xlu0 %v294, 124
        %v302 = vpop.permute.xlu0 %301
        %303 = vrot.lane.b32.xlu0 %v295, 124
        %v304 = vpop.permute.xlu0 %303
        %vm305 = vcmask 1014784
        %v306 = vsel %vm305, %v300, %v302
        %v307 = vsel %vm305, %v302, %v304
        %311 = vst [vmem:[#allocation2 + $0x78] sm:$0xff] %v306
        %312 = vst [vmem:[#allocation2 + $0x80] sm:$0xff] %v307
        %313 = vst.msk [vmem:[#allocation2 + $0x88] sm:$0xff] %vm222, %v304
        %v314 = vld [vmem:[%s170] sm:$0xff]
        %v315 = vld [vmem:[%s170 + $0x8] sm:$0xff]
        %v316 = vld [vmem:[%s170 + $0x10] sm:$0xff]
        %320 = vrot.lane.b32.xlu0 %v314, 87
        %v321 = vpop.permute.xlu0 %320
        %322 = vrot.lane.b32.xlu0 %v315, 87
        %v323 = vpop.permute.xlu0 %322
        %324 = vrot.lane.b32.xlu0 %v316, 87
        %v325 = vpop.permute.xlu0 %324
        %vm326 = vcmask 711680
        %v327 = vsel %vm326, %v321, %v323
        %v328 = vsel %vm326, %v323, %v325
        %332 = vst [vmem:[#allocation2 + $0x90] sm:$0xff] %v327
        %333 = vst [vmem:[#allocation2 + $0x98] sm:$0xff] %v328
        %334 = vst.msk [vmem:[#allocation2 + $0xa0] sm:$0xff] %vm222, %v325
        %v335 = vld [vmem:[%s170] sm:$0xff]
        %v336 = vld [vmem:[%s170 + $0x8] sm:$0xff]
        %v337 = vld [vmem:[%s170 + $0x10] sm:$0xff]
        %341 = vrot.lane.b32.xlu0 %v335, 88
        %v342 = vpop.permute.xlu0 %341
        %343 = vrot.lane.b32.xlu0 %v336, 88
        %v344 = vpop.permute.xlu0 %343
        %345 = vrot.lane.b32.xlu0 %v337, 88
        %v346 = vpop.permute.xlu0 %345
        %vm347 = vcmask 719872
        %v348 = vsel %vm347, %v342, %v344
        %v349 = vsel %vm347, %v344, %v346
        %353 = vst [vmem:[#allocation2 + $0xa8] sm:$0xff] %v348
        %354 = vst [vmem:[#allocation2 + $0xb0] sm:$0xff] %v349
        %355 = vst.msk [vmem:[#allocation2 + $0xb8] sm:$0xff] %vm222, %v346
        %v356 = vld [vmem:[%s170] sm:$0xff]
        %v357 = vld [vmem:[%s170 + $0x8] sm:$0xff]
        %v358 = vld [vmem:[%s170 + $0x10] sm:$0xff]
        %362 = vrot.lane.b32.xlu0 %v356, 86
        %v363 = vpop.permute.xlu0 %362
        %364 = vrot.lane.b32.xlu0 %v357, 86
        %v365 = vpop.permute.xlu0 %364
        %366 = vrot.lane.b32.xlu0 %v358, 86
        %v367 = vpop.permute.xlu0 %366
        %vm368 = vcmask 703488
        %v369 = vsel %vm368, %v363, %v365
        %v370 = vsel %vm368, %v365, %v367
        %374 = vst [vmem:[#allocation2 + $0xc0] sm:$0xff] %v369
        %375 = vst [vmem:[#allocation2 + $0xc8] sm:$0xff] %v370
        %376 = vst.msk [vmem:[#allocation2 + $0xd0] sm:$0xff] %vm222, %v367
        %v377 = vld [vmem:[%s170] sm:$0xff]
        %v378 = vld [vmem:[%s170 + $0x8] sm:$0xff]
        %v379 = vld [vmem:[%s170 + $0x10] sm:$0xff]
        %383 = vrot.lane.b32.xlu0 %v377, 86
        %v384 = vpop.permute.xlu0 %383
        %385 = vrot.lane.b32.xlu0 %v378, 86
        %v386 = vpop.permute.xlu0 %385
        %387 = vrot.lane.b32.xlu0 %v379, 86
        %v388 = vpop.permute.xlu0 %387
        %v389 = vsel %vm368, %v384, %v386
        %v390 = vsel %vm368, %v386, %v388
        %394 = vst [vmem:[#allocation2 + $0xd8] sm:$0xff] %v389
        %395 = vst [vmem:[#allocation2 + $0xe0] sm:$0xff] %v390
        %396 = vst.msk [vmem:[#allocation2 + $0xe8] sm:$0xff] %vm222, %v388
        %v397 = vld [vmem:[%s170] sm:$0xff]
        %v398 = vld [vmem:[%s170 + $0x8] sm:$0xff]
        %v399 = vld [vmem:[%s170 + $0x10] sm:$0xff]
        %403 = vrot.lane.b32.xlu0 %v397, 85
        %v404 = vpop.permute.xlu0 %403
        %405 = vrot.lane.b32.xlu0 %v398, 85
        %v406 = vpop.permute.xlu0 %405
        %407 = vrot.lane.b32.xlu0 %v399, 85
        %v408 = vpop.permute.xlu0 %407
        %vm409 = vcmask 695296
        %v410 = vsel %vm409, %v404, %v406
        %v411 = vsel %vm409, %v406, %v408
        %415 = vst [vmem:[#allocation2 + $0xf0] sm:$0xff] %v410
        %416 = vst [vmem:[#allocation2 + $0xf8] sm:$0xff] %v411
        %417 = vst.msk [vmem:[#allocation2 + $0x100] sm:$0xff] %vm222, %v408
        %v418 = vld [vmem:[%s170] sm:$0xff]
        %v419 = vld [vmem:[%s170 + $0x8] sm:$0xff]
        %v420 = vld [vmem:[%s170 + $0x10] sm:$0xff]
        %424 = vrot.lane.b32.xlu0 %v418, 84
        %v425 = vpop.permute.xlu0 %424
        %426 = vrot.lane.b32.xlu0 %v419, 84
        %v427 = vpop.permute.xlu0 %426
        %428 = vrot.lane.b32.xlu0 %v420, 84
        %v429 = vpop.permute.xlu0 %428
        %vm430 = vcmask 687104
        %v431 = vsel %vm430, %v425, %v427
        %v432 = vsel %vm430, %v427, %v429
        %436 = vst [vmem:[#allocation2 + $0x108] sm:$0xff] %v431
        %437 = vst [vmem:[#allocation2 + $0x110] sm:$0xff] %v432
        %438 = vst.msk [vmem:[#allocation2 + $0x118] sm:$0xff] %vm222, %v429
        %v439 = vld [vmem:[%s170] sm:$0xff]
        %v440 = vld [vmem:[%s170 + $0x8] sm:$0xff]
        %v441 = vld [vmem:[%s170 + $0x10] sm:$0xff]
        %445 = vrot.lane.b32.xlu0 %v439, 67
        %v446 = vpop.permute.xlu0 %445
        %447 = vrot.lane.b32.xlu0 %v440, 67
        %v448 = vpop.permute.xlu0 %447
        %449 = vrot.lane.b32.xlu0 %v441, 67
        %v450 = vpop.permute.xlu0 %449
        %vm451 = vcmask 547840
        %v452 = vsel %vm451, %v446, %v448
        %v453 = vsel %vm451, %v448, %v450
        %457 = vst [vmem:[#allocation2 + $0x120] sm:$0xff] %v452
        %458 = vst [vmem:[#allocation2 + $0x128] sm:$0xff] %v453
        %459 = vst.msk [vmem:[#allocation2 + $0x130] sm:$0xff] %vm222, %v450
        %v460 = vld [vmem:[%s170] sm:$0xff]
        %v461 = vld [vmem:[%s170 + $0x8] sm:$0xff]
        %v462 = vld [vmem:[%s170 + $0x10] sm:$0xff]
        %v463 = vld [vmem:[%s170 + $0x18] sm:$0xff]
        %468 = vrot.lane.b32.xlu0 %v460, 48
        %v469 = vpop.permute.xlu0 %468
        %470 = vrot.lane.b32.xlu0 %v461, 48
        %v471 = vpop.permute.xlu0 %470
        %472 = vrot.lane.b32.xlu0 %v462, 48
        %v473 = vpop.permute.xlu0 %472
        %474 = vrot.lane.b32.xlu0 %v463, 48
        %v475 = vpop.permute.xlu0 %474
        %vm476 = vcmask 392192
        %v477 = vsel %vm476, %v469, %v471
        %v478 = vsel %vm476, %v471, %v473
        %v479 = vsel %vm476, %v473, %v475
        %483 = vst [vmem:[#allocation2 + $0x138] sm:$0xff] %v477
        %484 = vst [vmem:[#allocation2 + $0x140] sm:$0xff] %v478
        %485 = vst.msk [vmem:[#allocation2 + $0x148] sm:$0xff] %vm222, %v479
        %v486 = vld [vmem:[%s170] sm:$0xff]
        %v487 = vld [vmem:[%s170 + $0x8] sm:$0xff]
        %v488 = vld [vmem:[%s170 + $0x10] sm:$0xff]
        %492 = vrot.lane.b32.xlu0 %v486, 66
        %v493 = vpop.permute.xlu0 %492
        %494 = vrot.lane.b32.xlu0 %v487, 66
        %v495 = vpop.permute.xlu0 %494
        %496 = vrot.lane.b32.xlu0 %v488, 66
        %v497 = vpop.permute.xlu0 %496
        %vm498 = vcmask 539648
        %v499 = vsel %vm498, %v493, %v495
        %v500 = vsel %vm498, %v495, %v497
        %504 = vst [vmem:[#allocation2 + $0x150] sm:$0xff] %v499
        %505 = vst [vmem:[#allocation2 + $0x158] sm:$0xff] %v500
        %506 = vst.msk [vmem:[#allocation2 + $0x160] sm:$0xff] %vm222, %v497
        %v507 = vld [vmem:[%s170] sm:$0xff]
        %v508 = vld [vmem:[%s170 + $0x8] sm:$0xff]
        %v509 = vld [vmem:[%s170 + $0x10] sm:$0xff]
        %v510 = vld [vmem:[%s170 + $0x18] sm:$0xff]
        %515 = vrot.lane.b32.xlu0 %v507, 46
        %v516 = vpop.permute.xlu0 %515
        %517 = vrot.lane.b32.xlu0 %v508, 46
        %v518 = vpop.permute.xlu0 %517
        %519 = vrot.lane.b32.xlu0 %v509, 46
        %v520 = vpop.permute.xlu0 %519
        %521 = vrot.lane.b32.xlu0 %v510, 46
        %v522 = vpop.permute.xlu0 %521
        %vm523 = vcmask 375808
        %v524 = vsel %vm523, %v516, %v518
        %v525 = vsel %vm523, %v518, %v520
        %v526 = vsel %vm523, %v520, %v522
        %530 = vst [vmem:[#allocation2 + $0x168] sm:$0xff] %v524
        %531 = vst [vmem:[#allocation2 + $0x170] sm:$0xff] %v525
        %532 = vst.msk [vmem:[#allocation2 + $0x178] sm:$0xff] %vm222, %v526
        %v533 = vld [vmem:[%s170] sm:$0xff]
        %v534 = vld [vmem:[%s170 + $0x8] sm:$0xff]
        %v535 = vld [vmem:[%s170 + $0x10] sm:$0xff]
        %539 = vrot.lane.b32.xlu0 %v533, 65
        %v540 = vpop.permute.xlu0 %539
        %541 = vrot.lane.b32.xlu0 %v534, 65
        %v542 = vpop.permute.xlu0 %541
        %543 = vrot.lane.b32.xlu0 %v535, 65
        %v544 = vpop.permute.xlu0 %543
        %vm545 = vcmask 531456
        %v546 = vsel %vm545, %v540, %v542
        %v547 = vsel %vm545, %v542, %v544
        %551 = vst [vmem:[#allocation2 + $0x180] sm:$0xff] %v546
        %552 = vst [vmem:[#allocation2 + $0x188] sm:$0xff] %v547
        %553 = vst.msk [vmem:[#allocation2 + $0x190] sm:$0xff] %vm222, %v544
        %v554 = vld [vmem:[%s170] sm:$0xff]
        %v555 = vld [vmem:[%s170 + $0x8] sm:$0xff]
        %v556 = vld [vmem:[%s170 + $0x10] sm:$0xff]
        %v557 = vld [vmem:[%s170 + $0x18] sm:$0xff]
        %562 = vrot.lane.b32.xlu0 %v554, 44
        %v563 = vpop.permute.xlu0 %562
        %564 = vrot.lane.b32.xlu0 %v555, 44
        %v565 = vpop.permute.xlu0 %564
        %566 = vrot.lane.b32.xlu0 %v556, 44
        %v567 = vpop.permute.xlu0 %566
        %568 = vrot.lane.b32.xlu0 %v557, 44
        %v569 = vpop.permute.xlu0 %568
        %vm570 = vcmask 359424
        %v571 = vsel %vm570, %v563, %v565
        %v572 = vsel %vm570, %v565, %v567
        %v573 = vsel %vm570, %v567, %v569
        %577 = vst [vmem:[#allocation2 + $0x198] sm:$0xff] %v571
        %578 = vst [vmem:[#allocation2 + $0x1a0] sm:$0xff] %v572
        %579 = vst.msk [vmem:[#allocation2 + $0x1a8] sm:$0xff] %vm222, %v573
        %v580 = vld [vmem:[#allocation5] sm:$0x1f]
        %v581 = vld [vmem:[#allocation5 + $0x8] sm:$0x1f]
        %v582 = vld [vmem:[#allocation2] sm:$0xff]
        %v583 = vld [vmem:[#allocation2 + $0x8] sm:$0xff]
        %v584 = vld [vmem:[#allocation2 + $0x10] sm:$0xff]
        %v585 = vld [vmem:[#allocation2 + $0x18] sm:$0xff]
        %v586 = vld [vmem:[#allocation2 + $0x20] sm:$0xff]
        %v587 = vld [vmem:[#allocation2 + $0x28] sm:$0xff]
        %v588 = vld [vmem:[#allocation2 + $0x30] sm:$0xff]
        %v589 = vld [vmem:[#allocation2 + $0x38] sm:$0xff]
        %v590 = vld [vmem:[#allocation2 + $0x40] sm:$0xff]
        %v591 = vld [vmem:[#allocation2 + $0x48] sm:$0xff]
        %v592 = vld [vmem:[#allocation2 + $0x50] sm:$0xff]
        %v593 = vld [vmem:[#allocation2 + $0x58] sm:$0xff]
        %v594 = vld [vmem:[#allocation2 + $0x60] sm:$0xff]
        %v595 = vld [vmem:[#allocation2 + $0x68] sm:$0xff]
        %v596 = vld [vmem:[#allocation2 + $0x70] sm:$0xff]
        %v597 = vld [vmem:[#allocation2 + $0x78] sm:$0xff]
        %v598 = vld [vmem:[#allocation2 + $0x80] sm:$0xff]
        %v599 = vld [vmem:[#allocation2 + $0x88] sm:$0xff]
        %v600 = vld [vmem:[#allocation2 + $0x90] sm:$0xff]
        %v601 = vld [vmem:[#allocation2 + $0x98] sm:$0xff]
        %v602 = vld [vmem:[#allocation2 + $0xa0] sm:$0xff]
        %v603 = vld [vmem:[#allocation2 + $0xa8] sm:$0xff]
        %v604 = vld [vmem:[#allocation2 + $0xb0] sm:$0xff]
        %v605 = vld [vmem:[#allocation2 + $0xb8] sm:$0xff]
        %v606 = vld [vmem:[#allocation2 + $0xc0] sm:$0xff]
        %v607 = vld [vmem:[#allocation2 + $0xc8] sm:$0xff]
        %v608 = vld [vmem:[#allocation2 + $0xd0] sm:$0xff]
        %v609 = vld [vmem:[#allocation2 + $0xd8] sm:$0xff]
        %v610 = vld [vmem:[#allocation2 + $0xe0] sm:$0xff]
        %v611 = vld [vmem:[#allocation2 + $0xe8] sm:$0xff]
        %v612 = vld [vmem:[#allocation2 + $0xf0] sm:$0xff]
        %v613 = vld [vmem:[#allocation2 + $0xf8] sm:$0xff]
        %v614 = vld [vmem:[#allocation2 + $0x100] sm:$0xff]
        %v615 = vld [vmem:[#allocation2 + $0x108] sm:$0xff]
        %v616 = vld [vmem:[#allocation2 + $0x110] sm:$0xff]
        %v617 = vld [vmem:[#allocation2 + $0x118] sm:$0xff]
        %v618 = vld [vmem:[#allocation2 + $0x120] sm:$0xff]
        %v619 = vld [vmem:[#allocation2 + $0x128] sm:$0xff]
        %v620 = vld [vmem:[#allocation2 + $0x130] sm:$0xff]
        %v621 = vld [vmem:[#allocation2 + $0x138] sm:$0xff]
        %v622 = vld [vmem:[#allocation2 + $0x140] sm:$0xff]
        %v623 = vld [vmem:[#allocation2 + $0x148] sm:$0xff]
        %v624 = vld [vmem:[#allocation2 + $0x150] sm:$0xff]
        %v625 = vld [vmem:[#allocation2 + $0x158] sm:$0xff]
        %v626 = vld [vmem:[#allocation2 + $0x160] sm:$0xff]
        %v627 = vld [vmem:[#allocation2 + $0x168] sm:$0xff]
        %v628 = vld [vmem:[#allocation2 + $0x170] sm:$0xff]
        %v629 = vld [vmem:[#allocation2 + $0x178] sm:$0xff]
        %v630 = vld [vmem:[#allocation2 + $0x180] sm:$0xff]
        %v631 = vld [vmem:[#allocation2 + $0x188] sm:$0xff]
        %v632 = vld [vmem:[#allocation2 + $0x190] sm:$0xff]
        %v633 = vld [vmem:[#allocation2 + $0x198] sm:$0xff]
        %v634 = vld [vmem:[#allocation2 + $0x1a0] sm:$0xff]
        %v635 = vld [vmem:[#allocation2 + $0x1a8] sm:$0xff]
        %v636 = vld [vmem:[%s2] sm:$0x1f]
        %638 = vset.pattern.permute.xlu0 0
        %639 = vperm.xlu0 %638, %v636
        %v640 = vpop.permute.xlu0 %639
        %vm642 = vcmask 130048
        %v644 = vsel %vm642, %v581, 0
        %646 = vmatprep.subr.mxu0 %v583
        %647 = vmatpush1.msra.mxu0 %v582
        %648 = vmatprep.subr.mxu0 %v586
        %649 = vmatpush1.msra.mxu0 %v585
        %650 = vmatprep.subr.mxu0 %v589
        %651 = vmatpush1.msra.mxu0 %v588
        %652 = vmatprep.subr.mxu0 %v592
        %653 = vmatpush1.msra.mxu0 %v591
        %654 = vmatprep.subr.mxu0 %v595
        %655 = vmatpush1.msra.mxu0 %v594
        %656 = vmatprep.subr.mxu0 %v598
        %657 = vmatpush1.msra.mxu0 %v597
        %658 = vmatprep.subr.mxu0 %v601
        %659 = vmatpush1.msra.mxu0 %v600
        %660 = vmatprep.subr.mxu0 %v604
        %661 = vmatpush1.msra.mxu0 %v603
        %662 = vmatprep.subr.mxu0 %v607
        %663 = vmatpush1.msra.mxu0 %v606
        %664 = vmatprep.subr.mxu0 %v610
        %665 = vmatpush1.msra.mxu0 %v609
        %666 = vmatprep.subr.mxu0 %v613
        %667 = vmatpush1.msra.mxu0 %v612
        %668 = vmatprep.subr.mxu0 %v616
        %669 = vmatpush1.msra.mxu0 %v615
        %670 = vmatprep.subr.mxu0 %v619
        %671 = vmatpush1.msra.mxu0 %v618
        %672 = vmatprep.subr.mxu0 %v622
        %673 = vmatpush1.msra.mxu0 %v621
        %674 = vmatprep.subr.mxu0 %v625
        %675 = vmatpush1.msra.mxu0 %v624
        %676 = vmatprep.subr.mxu0 %v628
        %677 = vmatpush1.msra.mxu0 %v627
        %678 = vmatprep.subr.mxu0 %v631
        %679 = vmatpush1.msra.mxu0 %v630
        %680 = vmatprep.subr.mxu0 %v634
        %681 = vmatpush1.msra.mxu0 %v633
        %682 = vmatprep.subr.mxu0 0.0
        %683 = vmatpush1.msra.mxu0 0.0
        %684 = vmatprep.subr.mxu0 0.0
        %685 = vmatpush1.msra.mxu0 0.0
        %686 = vmatprep.subr.mxu0 0.0
        %687 = vmatpush1.msra.mxu0 0.0
        %688 = vmatprep.subr.mxu0 0.0
        %689 = vmatpush1.msra.mxu0 0.0
        %690 = vmatprep.subr.mxu0 0.0
        %691 = vmatpush1.msra.mxu0 0.0
        %692 = vmatprep.subr.mxu0 0.0
        %693 = vmatpush1.msra.mxu0 0.0
        %694 = vmatprep.subr.mxu0 0.0
        %695 = vmatpush1.msra.mxu0 0.0
        %696 = vmatprep.subr.mxu0 0.0
        %697 = vmatpush1.msra.mxu0 0.0
        %698 = vmatprep.subr.mxu0 0.0
        %699 = vmatpush1.msra.mxu0 0.0
        %700 = vmatprep.subr.mxu0 0.0
        %701 = vmatpush1.msra.mxu0 0.0
        %702 = vmatprep.subr.mxu0 0.0
        %703 = vmatpush1.msra.mxu0 0.0
        %704 = vmatprep.subr.mxu0 0.0
        %705 = vmatpush1.msra.mxu0 0.0
        %706 = vmatprep.subr.mxu0 0.0
        %707 = vmatpush1.msra.mxu0 0.0
        %708 = vmatprep.subr.mxu0 0.0
        %709 = vmatpush1.msra.mxu0 0.0
        %710 = vmatprep.mubr.f32.mxu0 %v644
        %711 = vmatmul.mubr.f32.gmra.mrb[0].mxu0 %v580
        %v712 = vpop.f32.mrb[0].mxu0
        %v713 = vadd.f32 %v640, %v712
        %v714 = vpop.f32.mrb[0].mxu0
        %v715 = vadd.f32 %v640, %v714
        %716 = vdwg.mxu0
        %717 = vmatprep.subr.mxu0 0.0
        %718 = vmatpush1.msra.mxu0 %v584
        %719 = vmatprep.subr.mxu0 0.0
        %720 = vmatpush1.msra.mxu0 %v587
        %721 = vmatprep.subr.mxu0 0.0
        %722 = vmatpush1.msra.mxu0 %v590
        %723 = vmatprep.subr.mxu0 0.0
        %724 = vmatpush1.msra.mxu0 %v593
        %725 = vmatprep.subr.mxu0 0.0
        %726 = vmatpush1.msra.mxu0 %v596
        %727 = vmatprep.subr.mxu0 0.0
        %728 = vmatpush1.msra.mxu0 %v599
        %729 = vmatprep.subr.mxu0 0.0
        %730 = vmatpush1.msra.mxu0 %v602
        %731 = vmatprep.subr.mxu0 0.0
        %732 = vmatpush1.msra.mxu0 %v605
        %733 = vmatprep.subr.mxu0 0.0
        %734 = vmatpush1.msra.mxu0 %v608
        %735 = vmatprep.subr.mxu0 0.0
        %736 = vmatpush1.msra.mxu0 %v611
        %737 = vmatprep.subr.mxu0 0.0
        %738 = vmatpush1.msra.mxu0 %v614
        %739 = vmatprep.subr.mxu0 0.0
        %740 = vmatpush1.msra.mxu0 %v617
        %741 = vmatprep.subr.mxu0 0.0
        %742 = vmatpush1.msra.mxu0 %v620
        %743 = vmatprep.subr.mxu0 0.0
        %744 = vmatpush1.msra.mxu0 %v623
        %745 = vmatprep.subr.mxu0 0.0
        %746 = vmatpush1.msra.mxu0 %v626
        %747 = vmatprep.subr.mxu0 0.0
        %748 = vmatpush1.msra.mxu0 %v629
        %749 = vmatprep.subr.mxu0 0.0
        %750 = vmatpush1.msra.mxu0 %v632
        %751 = vmatprep.subr.mxu0 0.0
        %752 = vmatpush1.msra.mxu0 %v635
        %753 = vmatprep.subr.mxu0 0.0
        %754 = vmatpush1.msra.mxu0 0.0
        %755 = vmatprep.subr.mxu0 0.0
        %756 = vmatpush1.msra.mxu0 0.0
        %757 = vmatprep.subr.mxu0 0.0
        %758 = vmatpush1.msra.mxu0 0.0
        %759 = vmatprep.subr.mxu0 0.0
        %760 = vmatpush1.msra.mxu0 0.0
        %761 = vmatprep.subr.mxu0 0.0
        %762 = vmatpush1.msra.mxu0 0.0
        %763 = vmatprep.subr.mxu0 0.0
        %764 = vmatpush1.msra.mxu0 0.0
        %765 = vmatprep.subr.mxu0 0.0
        %766 = vmatpush1.msra.mxu0 0.0
        %767 = vmatprep.subr.mxu0 0.0
        %768 = vmatpush1.msra.mxu0 0.0
        %769 = vmatprep.subr.mxu0 0.0
        %770 = vmatpush1.msra.mxu0 0.0
        %771 = vmatprep.subr.mxu0 0.0
        %772 = vmatpush1.msra.mxu0 0.0
        %773 = vmatprep.subr.mxu0 0.0
        %774 = vmatpush1.msra.mxu0 0.0
        %775 = vmatprep.subr.mxu0 0.0
        %776 = vmatpush1.msra.mxu0 0.0
        %777 = vmatprep.subr.mxu0 0.0
        %778 = vmatpush1.msra.mxu0 0.0
        %779 = vmatprep.subr.mxu0 0.0
        %780 = vmatpush1.msra.mxu0 0.0
        %781 = vmatprep.mubr.f32.mxu0 %v644
        %782 = vmatmul.mubr.f32.gmra.mrb[0].mxu0 %v580
        %v783 = vpop.f32.mrb[0].mxu0
        %v784 = vadd.f32 %v640, %v783
        %v785 = vpop.f32.mrb[0].mxu0
        %786 = vdwg.mxu0
        %787 = vst [vmem:[%s201] sm:$0x1f] %v713
        %788 = vst [vmem:[%s201 + $0x8] sm:$0x1f] %v715
        %vm789 = vcmask 520192
        %790 = vst.msk [vmem:[%s201 + $0x10] sm:$0x1f] %vm789, %v784
        %p791 = scmp.lt.s32.totalorder %s18, 1
        %s792 = scalar_select %p791, %s18, 1
        %s793 = smul.addr %s792, 3
        %s794 = smul.addr %s793, 8
        %s795 = scalar_lea.vmem %s3, %s794
        // Predicated region
        $region41: #{tpu_custom_call.1} parent=31 // pred_check
          %p796 = pneg %p104
        $region42: #{tpu_custom_call.1} parent=31 // pred_check_branch
          %798 = sbr.rel (%p796) target = $region44
        $region43: #{tpu_custom_call.1} parent=31 // pred_region
          _
        $region44: #{tpu_custom_call.1} parent=31 // pred_fallthru
          _
      $region32: #{tpu_custom_call.1} parent=5 // pred_fallthru
        _
      %p799 = scmp.le.s32.totalorder 2, %s13
      // Predicated region
      $region45: #{tpu_custom_call.1} parent=5 // pred_check
        %p800 = pneg %p799
      $region46: #{tpu_custom_call.1} parent=5 // pred_check_branch
        %802 = sbr.rel (%p800) target = $region48
      $region47: #{tpu_custom_call.1} parent=5 // pred_region
        %s803 = ssub.s32 %s13, 2
        // Predicated region
        $region49: #{tpu_custom_call.1} parent=47 // pred_check
          %p804 = pneg %p110
        $region50: #{tpu_custom_call.1} parent=47 // pred_check_branch
          %806 = sbr.rel (%p804) target = $region52
        $region51: #{tpu_custom_call.1} parent=47 // pred_region
          %p807 = scmp.lt.s32.totalorder %s19, 1
          %s808 = scalar_select %p807, %s19, 1
          %s809 = smul.addr %s808, 3
          %s810 = smul.addr %s809, 8
          %s811 = scalar_lea.vmem %s3, %s810
        $region52: #{tpu_custom_call.1} parent=47 // pred_fallthru
          _
      $region48: #{tpu_custom_call.1} parent=5 // pred_fallthru
        _
    $region6: #{tpu_custom_call.1} parent=1 // loop_footer
      %s17 = sadd.s32 1, %s13
    $region7: #{tpu_custom_call.1} parent=1 // loop_footer_branch
      %12 = sbr.rel target = $region3
    $region8: #{tpu_custom_call.1} parent=1 // loop_exit
      _
    %812 = vsyncpa [#allocation4], 1
    %s813 = scalar_lea.sflag [#allocation4], 1
    %814 = vsyncpa %s813, 1
    %815 = vsyncpa [#allocation6], 1

</llo_original>
